<compile_context>
chip_gen: v7x
topology: tpu7x:2x2x1
jax: 0.10.0
libtpu: 0.0.40
codegen_flags: <defaults>
</compile_context>

<pallas_src>
import functools

import jax
import jax.numpy as jnp
from jax.experimental import pallas as pl
from jax.experimental.pallas import tpu as pltpu

_SQRT_2_OVER_PI = 0.7978845608028654


def _gelu_tanh(x):
    """tanh-approx GELU (BERT). Shared by kernel and reference."""
    c = jnp.float32(_SQRT_2_OVER_PI)
    c3 = jnp.float32(_SQRT_2_OVER_PI * 0.044715)
    x2 = x * x
    return 0.5 * x * (1.0 + jnp.tanh(x * (c + c3 * x2)))


def _chain_kernel(flags_ref, x_ref, w_ref, b_ref, o_ref, *, weights_resident):
    """One (token-tile, layer) grid step of the fused worker-layer chain.

    flags_ref: [L]          SMEM  scalar-prefetched per-layer GELU flags (int32)
    x_ref:     [tm, H]      VMEM  input activations (read only at layer 0)
    w_ref:     [L, H, H] or [H, H]   VMEM  weights (resident stack or per-layer block)
    b_ref:     [L, 1, H] or [1, H]   VMEM  biases
    o_ref:     [tm, H]      VMEM  output block; doubles as the resident
                                   cross-layer activation carry (f32).
    """
    l = pl.program_id(1)

    @pl.when(l == 0)
    def _():
        # Seed the resident carry with the input activations.
        o_ref[...] = x_ref[...]

    if weights_resident:
        w = w_ref[l]            # [H, H] slice of the VMEM-resident stack
        b = b_ref[l]            # [1, H]
    else:
        w = w_ref[...]          # streamed per-layer block
        b = b_ref[...]

    # bf16 operands into the MXU, f32 accumulation; bias add in f32.
    a = o_ref[...].astype(jnp.bfloat16)
    acc = jnp.dot(a, w, preferred_element_type=jnp.float32) + b

    flag = flags_ref[l]

    @pl.when(flag != 0)
    def _():
        o_ref[...] = _gelu_tanh(acc).astype(o_ref.dtype)

    @pl.when(flag == 0)
    def _():
        o_ref[...] = acc.astype(o_ref.dtype)


def _round_up(x, m):
    return ((x + m - 1) // m) * m


def _pick_token_tile(tokens, tm_target):
    """Token tile: multiple of 8 (f32 sublane) or the full token extent.

    For small inputs the tile is ~half the tokens so the 'parallel' grid axis
    has >= 2 iterations (both v7x TensorCores get work); large inputs use the
    VMEM-derived target.
    """
    tm_target = max(8, (tm_target // 8) * 8)
    if tokens <= 8:
        return max(tokens, 1)                      # single full-extent block
    if tokens <= 2 * tm_target:
        return max(8, _round_up((tokens + 1) // 2, 8))
    return tm_target


def fused_chain_apply(x, w_stack, b_stack, gelu_flags, *, n_gelu_layers=None,
                      tm=None, vmem_limit_bytes=None):
    """y = layer_{L-1}(...layer_0(x)...) in one pallas_call.

    x:          [T, H]      (f32)
    w_stack:    [L, H, H]   (bf16 at rest)
    b_stack:    [L, 1, H]   (f32)
    gelu_flags: [L]         (int32, nonzero = apply GELU)
    """
    tokens, h_in = x.shape
    n_layers, h_in_w, h_out = w_stack.shape
    assert h_in == h_in_w and h_in == h_out, "fused chain expects Linear(H, H)"
    # TODO(synk): for very large H (>= ~2048) add K/N tiling of the per-layer
    # matmul; a full HxH weight block crowds v7x's 64 MiB VMEM there.

    x_bytes = x.dtype.itemsize
    w_bytes = w_stack.dtype.itemsize
    weight_stack_bytes = n_layers * h_in * h_out * w_bytes
    bias_stack_bytes = int(b_stack.nbytes)

    # ---- generation-aware VMEM budget -------------------------------------
    try:
        phys_vmem = int(pltpu.get_tpu_info().vmem_capacity_bytes)
    except Exception:
        phys_vmem = 64 * 1024 * 1024         # conservative (v7x per-TC size)
    budget = phys_vmem - (8 << 20)           # headroom for Mosaic internals

    def _act_bytes(t):
        # double-buffered input tile + resident output/carry tile (x2 buffers)
        return 2 * t * h_in * x_bytes + 2 * t * h_out * x_bytes

    # ---- choose weight residency and target token tile --------------------
    if tm is not None:
        tm_target = max(8, int(tm))
        weights_resident = (weight_stack_bytes + bias_stack_bytes
                            + _act_bytes(tm_target) <= budget)
    else:
        tm_target, weights_resident = 256, False
        for t in (1024, 512, 256):           # prefer VMEM-resident weights
            if weight_stack_bytes + bias_stack_bytes + _act_bytes(t) <= budget:
                tm_target, weights_resident = t, True
                break
        if not weights_resident:
            # Streamed weights: bigger token tile => lower weight re-read
            # factor (T/tm) => stays under the HBM roofline on v6e/v7x.
            for t in (2048, 1024, 512, 256):
                need = (3 * h_in * h_out * w_bytes       # Buffered(3) weights
                        + 4 * h_out * 4                  # bias double buffer
                        + _act_bytes(t))
                if need <= budget:
                    tm_target = t
                    break

    tm_sel = _pick_token_tile(tokens, tm_target)
    padded_tokens = _round_up(tokens, max(tm_sel, 1))
    n_tiles = padded_tokens // tm_sel

    if padded_tokens != tokens:
        x_in = jnp.pad(x, ((0, padded_tokens - tokens), (0, 0)))
    else:
        x_in = x

    # ---- BlockSpecs --------------------------------------------------------
    if weights_resident:
        # Whole stack lives in VMEM once (constant block index, single buffer);
        # the kernel slices w_ref[l] / b_ref[l] per layer.
        w_spec = pl.BlockSpec((n_layers, h_in, h_out),
                              lambda i, l, flags: (0, 0, 0),
                              pipeline_mode=pl.Buffered(1))
        b_spec = pl.BlockSpec((n_layers, 1, h_out),
                              lambda i, l, flags: (0, 0, 0),
                              pipeline_mode=pl.Buffered(1))
    else:
        # Stream one layer's weights per step; depth-3 buffering absorbs HBM
        # jitter since DMA time ~ MXU time in this regime.
        w_spec = pl.BlockSpec((None, h_in, h_out),
                              lambda i, l, flags: (l, 0, 0),
                              pipeline_mode=pl.Buffered(3))
        b_spec = pl.BlockSpec((None, 1, h_out),
                              lambda i, l, flags: (l, 0, 0))

    grid = (n_tiles, n_layers)

    if n_gelu_layers is None:
        try:
            n_gelu_layers = int(jnp.sum(gelu_flags))
        except Exception:                    # traced flags: be conservative
            n_gelu_layers = n_layers
    weight_reads = 1 if weights_resident else n_tiles
    cost = pl.CostEstimate(
        flops=2 * padded_tokens * h_in * h_out * n_layers,
        transcendentals=padded_tokens * h_out * n_gelu_layers,
        bytes_accessed=int(x_in.nbytes)
        + padded_tokens * h_out * x_bytes
        + (weight_stack_bytes + bias_stack_bytes) * weight_reads,
    )

    if vmem_limit_bytes is None:
        vmem_limit_bytes = budget

    grid_spec = pltpu.PrefetchScalarGridSpec(
        num_scalar_prefetch=1,               # gelu_flags -> SMEM
        grid=grid,
        in_specs=[
            # Activations: one token tile, re-used across the layer axis.
            pl.BlockSpec((tm_sel, h_in), lambda i, l, flags: (i, 0)),
            w_spec,
            b_spec,
        ],
        # Output block is resident across the layer axis and doubles as the
        # cross-layer activation carry.
        out_specs=pl.BlockSpec((tm_sel, h_out), lambda i, l, flags: (i, 0)),
    )

    out = pl.pallas_call(
        functools.partial(_chain_kernel, weights_resident=weights_resident),
        out_shape=jax.ShapeDtypeStruct((padded_tokens, h_out), x.dtype),
        grid_spec=grid_spec,
        compiler_params=pltpu.CompilerParams(
            dimension_semantics=("parallel", "arbitrary"),
            vmem_limit_bytes=int(vmem_limit_bytes),
        ),
        cost_estimate=cost,
    )(gelu_flags, x_in, w_stack, b_stack)

    return out[:tokens] if padded_tokens != tokens else out


class DistributedCPURPCSequentialPallas:
    """JAX/Pallas analogue of DistributedCPURPCSequential.

    `worker_layers` is a list of (w [H, H], b [1, H], apply_gelu) tuples.
    forward(x) threads x through the layers exactly like the RPC loop, but the
    whole chain is fused into a single Pallas call (RRef creation / to_here()
    are transport no-ops here).
    """

    def __init__(self, *worker_layers):
        ws, bs, flags = [], [], []
        for (w, b, apply_gelu) in worker_layers:
            ws.append(jnp.asarray(w, dtype=jnp.bfloat16))        # bf16 at rest
            bs.append(jnp.asarray(b, dtype=jnp.float32).reshape(1, -1))
            flags.append(1 if apply_gelu else 0)
        self.w_stack = jnp.stack(ws)                             # [L, H, H]
        self.b_stack = jnp.stack(bs)                             # [L, 1, H]
        self.gelu_flags = jnp.asarray(flags, dtype=jnp.int32)    # [L]
        self._n_gelu = int(sum(flags))
        # TODO(synk): train()/eval()/parameter_rrefs() are RPC bookkeeping with
        # no kernel-side equivalent; only forward semantics are reproduced.
        # TODO(synk): heterogeneous per-layer widths would need per-layer calls
        # or padded stacking; this fused path assumes uniform Linear(H, H).

    def forward(self, x):
        return fused_chain_apply(x, self.w_stack, self.b_stack, self.gelu_flags,
                                 n_gelu_layers=self._n_gelu)

    __call__ = forward


def _reference_forward(x, w_stack, b_stack, gelu_flags):
    """Pure-JAX reference (same bf16-in / f32-accumulate numerics)."""
    y = x.astype(jnp.float32)
    for l in range(w_stack.shape[0]):
        acc = jnp.dot(y.astype(jnp.bfloat16), w_stack[l],
                      preferred_element_type=jnp.float32)
        acc = acc + b_stack[l]
        if bool(gelu_flags[l]):
            acc = _gelu_tanh(acc)
        y = acc
    return y.astype(x.dtype)


if __name__ == "__main__":
    batch, seq, hidden = 2, 8, 32
    tokens = batch * seq
    n_layers = 3

    key = jax.random.PRNGKey(0)
    kx, *kl = jax.random.split(key, 1 + 2 * n_layers)

    # Input activations: [batch, seq, hidden] -> flattened token-major layout.
    x = jax.random.normal(kx, (batch, seq, hidden), dtype=jnp.float32)
    x2d = x.reshape(tokens, hidden)

    # Worker-layer parameters: Linear(hidden, hidden) + GELU
    # (last layer has no activation, like a final projection head).
    layers = []
    for li in range(n_layers):
        w = jax.random.normal(kl[2 * li], (hidden, hidden), dtype=jnp.float32) * 0.05
        b = jax.random.normal(kl[2 * li + 1], (1, hidden), dtype=jnp.float32) * 0.01
        apply_gelu = li < n_layers - 1
        layers.append((w, b, apply_gelu))

    model = DistributedCPURPCSequentialPallas(*layers)

    out = model(x2d)
    out = jax.block_until_ready(out)

    ref = _reference_forward(x2d, model.w_stack, model.b_stack, model.gelu_flags)
    assert out.shape == (tokens, hidden)
    assert jnp.allclose(out, ref, atol=2e-3, rtol=2e-3), "mismatch vs reference"

    print("KERNEL_OK")
</pallas_src>

<mosaic_0001>
module attributes {stable_mosaic.version = 11 : i64} {
  func.func @_chain_kernel(%arg0: i32, %arg1: i32, %arg2: memref<3xi32, #tpu.memory_space<smem>>, %arg3: memref<8x32xf32, #tpu.memory_space<vmem>>, %arg4: memref<3x32x32xbf16, #tpu.memory_space<vmem>>, %arg5: memref<3x1x32xf32, #tpu.memory_space<vmem>>, %arg6: memref<8x32xf32, #tpu.memory_space<vmem>>) attributes {dimension_semantics = [#tpu.dimension_semantics<parallel>, #tpu.dimension_semantics<arbitrary>], iteration_bounds = array<i64: 2, 3>, scalar_prefetch = 1 : i64, scratch_operands = 0 : i64, tpu.core_type = #tpu.core_type<tc>, window_params = [{transform_indices = @transform_0, window_bounds = array<i64: 8, 32>}, {pipeline_mode = #tpu.pipeline_mode<synchronous>, transform_indices = @transform_1, window_bounds = array<i64: 3, 32, 32>}, {pipeline_mode = #tpu.pipeline_mode<synchronous>, transform_indices = @transform_2, window_bounds = array<i64: 3, 1, 32>}, {transform_indices = @transform_3, window_bounds = array<i64: 8, 32>}]} {
    %c0_i32 = arith.constant 0 : i32
    %0 = arith.cmpi eq, %arg1, %c0_i32 : i32
    %1 = arith.extui %0 : i1 to i32
    %c0_i32_0 = arith.constant 0 : i32
    %2 = arith.cmpi ne, %1, %c0_i32_0 : i32
    scf.if %2 {
      %c0_10 = arith.constant 0 : index
      %c0_11 = arith.constant 0 : index
      %22 = vector.load %arg3[%c0_10, %c0_11] : memref<8x32xf32, #tpu.memory_space<vmem>>, vector<8x32xf32>
      %c0_12 = arith.constant 0 : index
      %c0_13 = arith.constant 0 : index
      %23 = vector.load %arg6[%c0_12, %c0_13] : memref<8x32xf32, #tpu.memory_space<vmem>>, vector<8x32xf32>
      tpu.vector_store %arg6[%c0_12, %c0_13], %22 {strides = array<i32>} : memref<8x32xf32, #tpu.memory_space<vmem>>, vector<8x32xf32>,
    } else {
    }
    %3 = arith.index_cast %arg1 : i32 to index
    %c0 = arith.constant 0 : index
    %c0_1 = arith.constant 0 : index
    %4 = vector.load %arg4[%3, %c0, %c0_1] : memref<3x32x32xbf16, #tpu.memory_space<vmem>>, vector<1x32x32xbf16>
    %5 = vector.shape_cast %4 : vector<1x32x32xbf16> to vector<32x32xbf16>
    %6 = arith.index_cast %arg1 : i32 to index
    %c0_2 = arith.constant 0 : index
    %c0_3 = arith.constant 0 : index
    %7 = vector.load %arg5[%6, %c0_2, %c0_3] : memref<3x1x32xf32, #tpu.memory_space<vmem>>, vector<1x1x32xf32>
    %8 = vector.shape_cast %7 : vector<1x1x32xf32> to vector<1x32xf32>
    %c0_4 = arith.constant 0 : index
    %c0_5 = arith.constant 0 : index
    %9 = vector.load %arg6[%c0_4, %c0_5] : memref<8x32xf32, #tpu.memory_space<vmem>>, vector<8x32xf32>
    %10 = arith.truncf %9 : vector<8x32xf32> to vector<8x32xbf16>
    %cst = arith.constant dense<0.000000e+00> : vector<8x32xf32>
    %11 = tpu.matmul %10, %5, %cst {dimension_numbers = #tpu.dot_dimension_numbers<[1], [0], [0], [1], [0, 0, 1, 1], [], []>} : vector<8x32xbf16>, vector<32x32xbf16>, vector<8x32xf32> -> vector<8x32xf32>
    %12 = vector.broadcast %8 : vector<1x32xf32> to vector<8x32xf32>
    %13 = arith.addf %11, %12 : vector<8x32xf32>
    %14 = arith.index_cast %arg1 : i32 to index
    %15 = memref.load %arg2[%14] : memref<3xi32, #tpu.memory_space<smem>>
    %c0_i32_6 = arith.constant 0 : i32
    %16 = arith.cmpi ne, %15, %c0_i32_6 : i32
    %17 = arith.extui %16 : i1 to i32
    %c0_i32_7 = arith.constant 0 : i32
    %18 = arith.cmpi ne, %17, %c0_i32_7 : i32
    scf.if %18 {
      %22 = arith.mulf %13, %13 : vector<8x32xf32>
      %cst_10 = arith.constant 5.000000e-01 : f32
      %23 = vector.broadcast %cst_10 : f32 to vector<8x32xf32>
      %24 = arith.mulf %23, %13 : vector<8x32xf32>
      %cst_11 = arith.constant 0.0356774069 : f32
      %25 = vector.broadcast %cst_11 : f32 to vector<8x32xf32>
      %26 = arith.mulf %25, %22 : vector<8x32xf32>
      %cst_12 = arith.constant 0.797884583 : f32
      %27 = vector.broadcast %cst_12 : f32 to vector<8x32xf32>
      %28 = arith.addf %27, %26 : vector<8x32xf32>
      %29 = arith.mulf %13, %28 : vector<8x32xf32>
      %30 = math.tanh %29 : vector<8x32xf32>
      %cst_13 = arith.constant 1.000000e+00 : f32
      %31 = vector.broadcast %cst_13 : f32 to vector<8x32xf32>
      %32 = arith.addf %31, %30 : vector<8x32xf32>
      %33 = arith.mulf %24, %32 : vector<8x32xf32>
      %c0_14 = arith.constant 0 : index
      %c0_15 = arith.constant 0 : index
      %34 = vector.load %arg6[%c0_14, %c0_15] : memref<8x32xf32, #tpu.memory_space<vmem>>, vector<8x32xf32>
      tpu.vector_store %arg6[%c0_14, %c0_15], %33 {strides = array<i32>} : memref<8x32xf32, #tpu.memory_space<vmem>>, vector<8x32xf32>,
    } else {
    }
    %c0_i32_8 = arith.constant 0 : i32
    %19 = arith.cmpi eq, %15, %c0_i32_8 : i32
    %20 = arith.extui %19 : i1 to i32
    %c0_i32_9 = arith.constant 0 : i32
    %21 = arith.cmpi ne, %20, %c0_i32_9 : i32
    scf.if %21 {
      %c0_10 = arith.constant 0 : index
      %c0_11 = arith.constant 0 : index
      %22 = vector.load %arg6[%c0_10, %c0_11] : memref<8x32xf32, #tpu.memory_space<vmem>>, vector<8x32xf32>
      tpu.vector_store %arg6[%c0_10, %c0_11], %13 {strides = array<i32>} : memref<8x32xf32, #tpu.memory_space<vmem>>, vector<8x32xf32>,
    } else {
    }
    return
  }
  func.func @transform_0(%arg0: i32, %arg1: i32, %arg2: memref<3xi32, #tpu.memory_space<smem>>) -> (i32, i32) {
    %c0_i32 = arith.constant 0 : i32
    %c0_i32_0 = arith.constant 0 : i32
    return %arg0, %c0_i32 : i32, i32
  }
  func.func @transform_1(%arg0: i32, %arg1: i32, %arg2: memref<3xi32, #tpu.memory_space<smem>>) -> (i32, i32, i32) {
    %c0_i32 = arith.constant 0 : i32
    %c0_i32_0 = arith.constant 0 : i32
    %c0_i32_1 = arith.constant 0 : i32
    %c0_i32_2 = arith.constant 0 : i32
    return %c0_i32, %c0_i32_0, %c0_i32_1 : i32, i32, i32
  }
  func.func @transform_2(%arg0: i32, %arg1: i32, %arg2: memref<3xi32, #tpu.memory_space<smem>>) -> (i32, i32, i32) {
    %c0_i32 = arith.constant 0 : i32
    %c0_i32_0 = arith.constant 0 : i32
    %c0_i32_1 = arith.constant 0 : i32
    %c0_i32_2 = arith.constant 0 : i32
    return %c0_i32, %c0_i32_0, %c0_i32_1 : i32, i32, i32
  }
  func.func @transform_3(%arg0: i32, %arg1: i32, %arg2: memref<3xi32, #tpu.memory_space<smem>>) -> (i32, i32) {
    %c0_i32 = arith.constant 0 : i32
    %c0_i32_0 = arith.constant 0 : i32
    return %arg0, %c0_i32 : i32, i32
  }
}

</mosaic_0001>

<llo_original>
// kernel: tpu_custom_call.1
$region0: #{tpu_custom_call.1}
  #allocation0 [shape = 'u32[]', space=smem, size = 0x4, offset = 0x4, fixed_abs, tag = 'smem constant byte address 0x4 - core index']
  #allocation1 [shape = 'u32[144,128]{1,0:T(1,128)}', space=vmem, size = 0x12000, scoped, tag = 'internal scratch']
  #allocation2 [shape = 's32[1]{0}', space=sflag, size = 0x4, scoped, tag = 'scoped memory for tpu_custom_call.1']
  #allocation3 [shape = 'u8[512]{0}', space=smem, size = 0x200, scoped, tag = 'prefetched SMEM operand 0']
  %s0 = inlined_call_operand.hbm [shape: s32[3], index: 0, kind: input, shape index: {}]
  %s1 = inlined_call_operand.hbm [shape: f32[16,32], index: 1, kind: input, shape index: {}]
  %s2 = inlined_call_operand.hbm [shape: bf16[3,32,32], index: 2, kind: input, shape index: {}]
  %s3 = inlined_call_operand.vmem [shape: f32[3,1,32], index: 3, kind: input, shape index: {}]
  %s4 = inlined_call_operand.hbm [shape: f32[16,32], index: 4, kind: output, shape index: {}]
  %s5 = sld [smem:[#allocation0]]
  $region65: #{tpu_custom_call.1} parent=0
    _
  %s7 = ssub.s32 1, %s5
  %s8 = scalar_select 0, %s7, %s5
  %10 = dma.hbm_to_smem %s0, 16, [#allocation3], [#allocation2]
  %11 = dma.done [#allocation2], 16
  %12 = sfence
  $region1: #{tpu_custom_call.1} parent=0
    #allocation4 [shape = 'u8[8192]{0}', space=vmem, size = 0x2000, scoped, tag = 'input window, operand 1']
    #allocation5 [shape = 's32[2]{0}', space=sflag, size = 0x8, scoped, tag = 'scoped memory for tpu_custom_call.1']
    #allocation6 [shape = 's32[2]{0}', space=sflag, size = 0x8, scoped, tag = 'scoped memory for tpu_custom_call.1']
    #allocation7 [shape = 'u8[24576]{0}', space=vmem, size = 0x6000, scoped, tag = 'input window, operand 2, single buffered']
    #allocation8 [shape = 's32[1]{0}', space=sflag, size = 0x4, scoped, tag = 'scoped memory for tpu_custom_call.1']
    #allocation9 [shape = 'u8[8192]{0}', space=vmem, size = 0x2000, scoped, tag = 'output window, operand 0']
    %13 = vsyncpa [#allocation5], 0
    %s14 = scalar_lea.sflag [#allocation5], 1
    %15 = vsyncpa %s14, 0
    %16 = vsyncpa [#allocation8], 0
    %17 = vsyncpa [#allocation6], 0
    %s18 = scalar_lea.sflag [#allocation6], 1
    %19 = vsyncpa %s18, 0
    loop: start=0, step=1, limit=8
    $region2: #{tpu_custom_call.1} parent=1 // loop_pre_header
      _
    $region3: #{tpu_custom_call.1} parent=1 // loop_header
      %s21 = sphi 0, %s25
      %p22 = scmp.ge.s32.totalorder %s21, 8
      %s28 = sphi 0, %s40
      %s29 = sphi 0, %s36
      %s30 = sphi 0, %s28
      %s31 = sphi 0, %s29
      %s32 = sphi 0, %s30
      %s33 = sphi 0, %s31
      %s43 = sphi 0, %s45
      %s46 = sphi 0, %s43
      %s47 = sphi 0, %s46
      %s63 = sphi 0, %s47
      %s67 = sphi 0, %s67
      %s69 = sphi 0, %s67
      %s70 = sphi 0, %s69
      %s84 = sphi 0, %s70
      %s88 = sphi 0, %s88
      %s90 = sphi 0, %s88
      %s91 = sphi 0, %s90
      %s105 = sphi 0, %s91
      %s111 = sphi 0, %s113
      %s114 = sphi 0, %s111
      %s115 = sphi 0, %s114
      %s131 = sphi 0, %s115
    $region4: #{tpu_custom_call.1} parent=1 // loop_header_branch
      %24 = sbr.rel (%p22) target = $region8
    $region5: #{tpu_custom_call.1} parent=1 // loop_body
      %s26 = ssub.s32 %s21, 1
      %s27 = ssub.s32 %s21, 2
      %s34 = sadd.s32 1, %s29
      %p35 = scmp.ge.s32.totalorder %s34, 3
      %s36 = scalar_select %p35, 0, %s34
      %s37 = sadd.s32 1, %s28
      %s38 = scalar_select %p35, %s37, %s28
      %p39 = scmp.ge.s32.totalorder %s38, 2
      %s40 = scalar_select %p39, 0, %s38
      %s41 = ssub.s32 %s28, %s40
      %p42 = scmp.eq.s32.totalorder %s41, 0
      %s44 = sadd.s32 %s43, 1
      %s45 = scalar_select %p42, %s43, %s44
      %p48 = pneg %p42
      %p49 = scmp.eq.s32.totalorder %s21, 5
      %p50 = por %p48, %p49
      %p51 = scmp.ne.s32.totalorder %s43, %s46
      %p52 = scmp.eq.s32.totalorder %s21, 0
      %p53 = por %p51, %p52
      %p54 = scmp.ne.s32.totalorder %s43, %s46
      %p55 = scmp.eq.s32.totalorder %s26, 5
      %p56 = por %p54, %p55
      %p57 = scmp.ne.s32.totalorder %s46, %s47
      %p58 = scmp.eq.s32.totalorder %s26, 0
      %p59 = por %p57, %p58
      %p60 = scmp.ne.s32.totalorder %s46, %s47
      %p61 = scmp.eq.s32.totalorder %s27, 5
      %p62 = por %p60, %p61
      %p64 = scmp.ne.s32.totalorder %s47, %s63
      %p65 = scmp.eq.s32.totalorder %s27, 0
      %p66 = por %p64, %p65
      %s68 = sadd.s32 %s67, 1
      %p71 = scmp.eq.s32.totalorder %s21, 5
      %p72 = scmp.ne.s32.totalorder %s67, %s69
      %p73 = scmp.eq.s32.totalorder %s21, 0
      %p74 = por %p72, %p73
      %p75 = scmp.ne.s32.totalorder %s67, %s69
      %p76 = scmp.eq.s32.totalorder %s26, 5
      %p77 = por %p75, %p76
      %p78 = scmp.ne.s32.totalorder %s69, %s70
      %p79 = scmp.eq.s32.totalorder %s26, 0
      %p80 = por %p78, %p79
      %p81 = scmp.ne.s32.totalorder %s69, %s70
      %p82 = scmp.eq.s32.totalorder %s27, 5
      %p83 = por %p81, %p82
      %p85 = scmp.ne.s32.totalorder %s70, %s84
      %p86 = scmp.eq.s32.totalorder %s27, 0
      %p87 = por %p85, %p86
      %s89 = sadd.s32 %s88, 1
      %p92 = scmp.eq.s32.totalorder %s21, 5
      %p93 = scmp.ne.s32.totalorder %s88, %s90
      %p94 = scmp.eq.s32.totalorder %s21, 0
      %p95 = por %p93, %p94
      %p96 = scmp.ne.s32.totalorder %s88, %s90
      %p97 = scmp.eq.s32.totalorder %s26, 5
      %p98 = por %p96, %p97
      %p99 = scmp.ne.s32.totalorder %s90, %s91
      %p100 = scmp.eq.s32.totalorder %s26, 0
      %p101 = por %p99, %p100
      %p102 = scmp.ne.s32.totalorder %s90, %s91
      %p103 = scmp.eq.s32.totalorder %s27, 5
      %p104 = por %p102, %p103
      %p106 = scmp.ne.s32.totalorder %s91, %s105
      %p107 = scmp.eq.s32.totalorder %s27, 0
      %p108 = por %p106, %p107
      %s109 = ssub.s32 %s28, %s40
      %p110 = scmp.eq.s32.totalorder %s109, 0
      %s112 = sadd.s32 %s111, 1
      %s113 = scalar_select %p110, %s111, %s112
      %p116 = pneg %p110
      %p117 = scmp.eq.s32.totalorder %s21, 5
      %p118 = por %p116, %p117
      %p119 = scmp.ne.s32.totalorder %s111, %s114
      %p120 = scmp.eq.s32.totalorder %s21, 0
      %p121 = por %p119, %p120
      %p122 = scmp.ne.s32.totalorder %s111, %s114
      %p123 = scmp.eq.s32.totalorder %s26, 5
      %p124 = por %p122, %p123
      %p125 = scmp.ne.s32.totalorder %s114, %s115
      %p126 = scmp.eq.s32.totalorder %s26, 0
      %p127 = por %p125, %p126
      %p128 = scmp.ne.s32.totalorder %s114, %s115
      %p129 = scmp.eq.s32.totalorder %s27, 5
      %p130 = por %p128, %p129
      %p132 = scmp.ne.s32.totalorder %s115, %s131
      %p133 = scmp.eq.s32.totalorder %s27, 0
      %p134 = por %p132, %p133
      %p135 = scmp.le.s32.totalorder 1, %s21
      %p136 = scmp.lt.s32.totalorder %s21, 7
      %p137 = pnand %p135, %p136
      %p138 = pneg %p137
      // Predicated region
      $region9: #{tpu_custom_call.1} parent=5 // pred_check
        _
      $region10: #{tpu_custom_call.1} parent=5 // pred_check_branch
        %140 = sbr.rel (%p137) target = $region12
      $region11: #{tpu_custom_call.1} parent=5 // pred_region
        %s141 = ssub.s32 %s21, 1
        // Predicated region
        $region13: #{tpu_custom_call.1} parent=11 // pred_check
          %p142 = pneg %p80
        $region14: #{tpu_custom_call.1} parent=11 // pred_check_branch
          %144 = sbr.rel (%p142) target = $region16
        $region15: #{tpu_custom_call.1} parent=11 // pred_region
          %s146 = ssub.s32 768, 768
          %147 = vsyncadd [#allocation8], %s146
          %s148 = sshll.u32 [#allocation7], 4
          %s149 = int_to_ptr.vmem [resolvable:$true] %s148
          %154 = dma.hbm_to_vmem [thread:$0]  %s2, 768, %s149, [#allocation8], 64, 64, 4
        $region16: #{tpu_custom_call.1} parent=11 // pred_fallthru
          _
        // Predicated region
        $region17: #{tpu_custom_call.1} parent=11 // pred_check
          %p155 = pneg %p101
        $region18: #{tpu_custom_call.1} parent=11 // pred_check_branch
          %157 = sbr.rel (%p155) target = $region20
        $region19: #{tpu_custom_call.1} parent=11 // pred_region
          _
        $region20: #{tpu_custom_call.1} parent=11 // pred_fallthru
          _
      $region12: #{tpu_custom_call.1} parent=5 // pred_fallthru
        _
      %p158 = scmp.lt.s32.totalorder %s21, 6
      // Predicated region
      $region21: #{tpu_custom_call.1} parent=5 // pred_check
        %p159 = pneg %p158
      $region22: #{tpu_custom_call.1} parent=5 // pred_check_branch
        %161 = sbr.rel (%p159) target = $region24
      $region23: #{tpu_custom_call.1} parent=5 // pred_region
        // Predicated region
        $region25: #{tpu_custom_call.1} parent=23 // pred_check
          %p162 = pneg %p53
        $region26: #{tpu_custom_call.1} parent=23 // pred_check_branch
          %164 = sbr.rel (%p162) target = $region28
        $region27: #{tpu_custom_call.1} parent=23 // pred_region
          %s165 = sand.u32 %s43, 1
          %s166 = scalar_lea.sflag [#allocation5], %s165
          %s167 = sand.u32 %s43, 1
          %s168 = smul.addr %s167, 8
          %s169 = scalar_lea.vmem [#allocation4], %s168
          %s171 = ssub.s32 128, 128
          %172 = vsyncadd %s166, %s171
          %s173 = smul.addr %s28, 128
          %s174 = scalar_lea.hbm %s1, %s173
          %s176 = sshll.u32 %s169, 4
          %s177 = int_to_ptr.vmem [resolvable:$true] %s176
          %179 = dma.hbm_to_vmem [thread:$0]  %s174, 128, %s177, %s166
        $region28: #{tpu_custom_call.1} parent=23 // pred_fallthru
          _
      $region24: #{tpu_custom_call.1} parent=5 // pred_fallthru
        _
      %p180 = scmp.le.s32.totalorder 1, %s21
      %p181 = scmp.lt.s32.totalorder %s21, 7
      %p182 = pnand %p180, %p181
      %p183 = pneg %p182
      // Predicated region
      $region29: #{tpu_custom_call.1} parent=5 // pred_check
        _
      $region30: #{tpu_custom_call.1} parent=5 // pred_check_branch
        %185 = sbr.rel (%p182) target = $region32
      $region31: #{tpu_custom_call.1} parent=5 // pred_region
        %s186 = ssub.s32 %s21, 1
        %s187 = sand.u32 %s46, 1
        %s188 = scalar_lea.sflag [#allocation5], %s187
        %s189 = sand.u32 %s46, 1
        %s190 = smul.addr %s189, 8
        %s191 = scalar_lea.vmem [#allocation4], %s190
        // Predicated region
        $region33: #{tpu_custom_call.1} parent=31 // pred_check
          %p192 = pneg %p59
        $region34: #{tpu_custom_call.1} parent=31 // pred_check_branch
          %194 = sbr.rel (%p192) target = $region36
        $region35: #{tpu_custom_call.1} parent=31 // pred_region
          %195 = dma.done %s188, 128
        $region36: #{tpu_custom_call.1} parent=31 // pred_fallthru
          _
        // Predicated region
        $region37: #{tpu_custom_call.1} parent=31 // pred_check
          %p196 = pneg %p80
        $region38: #{tpu_custom_call.1} parent=31 // pred_check_branch
          %198 = sbr.rel (%p196) target = $region40
        $region39: #{tpu_custom_call.1} parent=31 // pred_region
          %199 = dma.done [#allocation8], 768
        $region40: #{tpu_custom_call.1} parent=31 // pred_fallthru
          _
        %s200 = sand.u32 %s46, 1
        %s201 = scalar_lea.sflag [#allocation5], %s200
        %s202 = sand.u32 %s46, 1
        %s203 = smul.addr %s202, 8
        %s204 = scalar_lea.vmem [#allocation4], %s203
        %p205 = pneg %p59
        %p206 = pneg %p56
        %p207 = pneg %p80
        %p208 = pneg %p77
        %p209 = pneg %p101
        %p210 = pneg %p98
        %p211 = pneg %p127
        %p212 = pneg %p124
        %s213 = sand.u32 %s114, 1
        %s214 = scalar_lea.sflag [#allocation6], %s213
        %s215 = sand.u32 %s114, 1
        %s216 = smul.addr %s215, 8
        %s217 = scalar_lea.vmem [#allocation9], %s216
        %p219 = scmp.eq.s32.totalorder %s31, 0
        // Predicated region
        $region41: #{tpu_custom_call.1} parent=31 // pred_check
          %p220 = pneg %p219
        $region42: #{tpu_custom_call.1} parent=31 // pred_check_branch
          %222 = sbr.rel (%p220) target = $region44
        $region43: #{tpu_custom_call.1} parent=31 // pred_region
          %v223 = vld [vmem:[%s191] sm:$0xff]
          %vm224 = vcmask 261120
          %225 = vst.msk [vmem:[%s217] sm:$0xff] %vm224, %v223
        $region44: #{tpu_custom_call.1} parent=31 // pred_fallthru
          _
        %s226 = smul.u32 %s31, 4
        %s227 = smul.addr %s226, 4
        %s228 = scalar_lea.vmem [#allocation7], %s227
        %v229 = vld [vmem:[%s228] sm:$0xf]
        %v230 = vld [vmem:[%s228 + $0x4] sm:$0xf]
        %v231 = vld [vmem:[%s228 + $0x8] sm:$0xf]
        %v232 = vld [vmem:[%s228 + $0xc] sm:$0xf]
        %s233 = scalar_lea.vmem %s3, %s31
        %v234 = vld [vmem:[%s233] sm:$0x1]
        %v235 = vld [vmem:[%s217] sm:$0xff]
        %v236 = vpack.c.bf16 %v235, %v235
        %v238 = vlaneseq
        %v239 = vshrl.u32 %v238, 7
        %v240 = vsub.s32 0, %v239
        %v241 = vrot.slane %v234, %v240
        %v247 = vunpack.c.l.b16 %v229
        %v248 = vunpack.c.l.b16 %v230
        %v249 = vunpack.c.l.b16 %v231
        %v250 = vunpack.c.l.b16 %v232
        %v251 = vpack.c.b16 %v248, %v247
        %v252 = vpack.c.b16 %v250, %v249
        %vm255 = vcmask 261120
        %v257 = vsel %vm255, %v236, 0
        %259 = vmatprep.subr.bf16.mxu0 0
        %260 = vmatpush1.bf16.msra.mxu0 %v251
        %261 = vmatprep.subr.bf16.mxu0 0
        %262 = vmatpush1.bf16.msra.mxu0 %v252
        %263 = vmatprep.subr.bf16.mxu0 0
        %264 = vmatpush1.bf16.msra.mxu0 0
        %265 = vmatprep.subr.bf16.mxu0 0
        %266 = vmatpush1.bf16.msra.mxu0 0
        %267 = vmatprep.subr.bf16.mxu0 0
        %268 = vmatpush1.bf16.msra.mxu0 0
        %269 = vmatprep.subr.bf16.mxu0 0
        %270 = vmatpush1.bf16.msra.mxu0 0
        %271 = vmatprep.subr.bf16.mxu0 0
        %272 = vmatpush1.bf16.msra.mxu0 0
        %273 = vmatprep.subr.bf16.mxu0 0
        %274 = vmatpush1.bf16.msra.mxu0 0
        %275 = vmatprep.subr.bf16.mxu0 0
        %276 = vmatpush1.bf16.msra.mxu0 0
        %277 = vmatprep.subr.bf16.mxu0 0
        %278 = vmatpush1.bf16.msra.mxu0 0
        %279 = vmatprep.subr.bf16.mxu0 0
        %280 = vmatpush1.bf16.msra.mxu0 0
        %281 = vmatprep.subr.bf16.mxu0 0
        %282 = vmatpush1.bf16.msra.mxu0 0
        %283 = vmatprep.subr.bf16.mxu0 0
        %284 = vmatpush1.bf16.msra.mxu0 0
        %285 = vmatprep.subr.bf16.mxu0 0
        %286 = vmatpush1.bf16.msra.mxu0 0
        %287 = vmatprep.subr.bf16.mxu0 0
        %288 = vmatpush1.bf16.msra.mxu0 0
        %289 = vmatprep.subr.bf16.mxu0 0
        %290 = vmatpush1.bf16.msra.mxu0 0
        %291 = vmatprep.mubr.bf16.mxu0 0
        %292 = vmatmul.mubr.bf16.gmra.mrb[0].mxu0 %v257
        %v293 = vpop.f32.mrb[0].mxu0
        %v294 = vadd.f32 %v241, %v293
        %v295 = vpop.f32.mrb[0].mxu0
        %v296 = vpop.f32.mrb[0].mxu0
        %v297 = vpop.f32.mrb[0].mxu0
        %298 = vdwg.mxu0
        %s299 = sld [smem:[#allocation3 + %s31]]
        %p300 = scmp.ne.s32.totalorder %s299, 0
        // Predicated region
        $region45: #{tpu_custom_call.1} parent=31 // pred_check
          %p301 = pneg %p300
        $region46: #{tpu_custom_call.1} parent=31 // pred_check_branch
          %303 = sbr.rel (%p301) target = $region48
        $region47: #{tpu_custom_call.1} parent=31 // pred_region
          %v304 = vmul.f32 %v294, %v294
          %v305 = vmul.f32 %v294, 0.5
          %v306 = vmul.f32 %v304, 0.035677407
          %v307 = vadd.f32 %v306, 0.7978846
          %v308 = vmul.f32 %v294, %v307
          %v309 = vtanh.pop %v308
          %v310 = vadd.f32 %v309, 1.0
          %v311 = vmul.f32 %v305, %v310
          %312 = vst.msk [vmem:[%s217] sm:$0xff] %vm255, %v311
        $region48: #{tpu_custom_call.1} parent=31 // pred_fallthru
          _
        %p313 = scmp.eq.s32.totalorder %s299, 0
        // Predicated region
        $region49: #{tpu_custom_call.1} parent=31 // pred_check
          %p314 = pneg %p313
        $region50: #{tpu_custom_call.1} parent=31 // pred_check_branch
          %316 = sbr.rel (%p314) target = $region52
        $region51: #{tpu_custom_call.1} parent=31 // pred_region
          %317 = vst.msk [vmem:[%s217] sm:$0xff] %vm255, %v294
        $region52: #{tpu_custom_call.1} parent=31 // pred_fallthru
          _
        %s318 = sand.u32 %s114, 1
        %s319 = scalar_lea.sflag [#allocation6], %s318
        %s320 = sand.u32 %s114, 1
        %s321 = smul.addr %s320, 8
        %s322 = scalar_lea.vmem [#allocation9], %s321
        // Predicated region
        $region53: #{tpu_custom_call.1} parent=31 // pred_check
          %p323 = pneg %p124
        $region54: #{tpu_custom_call.1} parent=31 // pred_check_branch
          %325 = sbr.rel (%p323) target = $region56
        $region55: #{tpu_custom_call.1} parent=31 // pred_region
          %s327 = ssub.s32 128, 128
          %328 = vsyncadd %s319, %s327
          %s329 = smul.addr %s30, 128
          %s330 = scalar_lea.hbm %s4, %s329
          %s332 = sshll.u32 %s322, 4
          %s333 = int_to_ptr.vmem [resolvable:$true] %s332
          %335 = dma.vmem_to_hbm [thread:$0]  %s333, 128, %s330, %s319
        $region56: #{tpu_custom_call.1} parent=31 // pred_fallthru
          _
      $region32: #{tpu_custom_call.1} parent=5 // pred_fallthru
        _
      %p336 = scmp.le.s32.totalorder 2, %s21
      // Predicated region
      $region57: #{tpu_custom_call.1} parent=5 // pred_check
        %p337 = pneg %p336
      $region58: #{tpu_custom_call.1} parent=5 // pred_check_branch
        %339 = sbr.rel (%p337) target = $region60
      $region59: #{tpu_custom_call.1} parent=5 // pred_region
        %s340 = ssub.s32 %s21, 2
        // Predicated region
        $region61: #{tpu_custom_call.1} parent=59 // pred_check
          %p341 = pneg %p130
        $region62: #{tpu_custom_call.1} parent=59 // pred_check_branch
          %343 = sbr.rel (%p341) target = $region64
        $region63: #{tpu_custom_call.1} parent=59 // pred_region
          %s344 = sand.u32 %s115, 1
          %s345 = scalar_lea.sflag [#allocation6], %s344
          %s346 = sand.u32 %s115, 1
          %s347 = smul.addr %s346, 8
          %s348 = scalar_lea.vmem [#allocation9], %s347
          %349 = dma.done %s345, 128
        $region64: #{tpu_custom_call.1} parent=59 // pred_fallthru
          _
      $region60: #{tpu_custom_call.1} parent=5 // pred_fallthru
        _
    $region6: #{tpu_custom_call.1} parent=1 // loop_footer
      %s25 = sadd.s32 1, %s21
    $region7: #{tpu_custom_call.1} parent=1 // loop_footer_branch
      %20 = sbr.rel target = $region3
    $region8: #{tpu_custom_call.1} parent=1 // loop_exit
      _
    %350 = vsyncpa [#allocation5], 1
    %s351 = scalar_lea.sflag [#allocation5], 1
    %352 = vsyncpa %s351, 1
    %353 = vsyncpa [#allocation8], 1
    %354 = vsyncpa [#allocation6], 1
    %s355 = scalar_lea.sflag [#allocation6], 1
    %356 = vsyncpa %s355, 1

</llo_original>
